<compile_context>
chip_gen: v7x
topology: tpu7x:2x2x1
jax: 0.10.0
libtpu: 0.0.40
codegen_flags: <defaults>
</compile_context>

<pallas_src>
import functools

import jax
import jax.numpy as jnp
from jax.experimental import pallas as pl
from jax.experimental.pallas import tpu as pltpu

LANE = 128      # TPU lane width (last dim)
SUBLANE = 8     # f32 sublane count (second-to-last dim)
_NEG_BIG = -1e30
_TILE_CAP = 512  # max batch rows per grid step (blocks stay KB-scale)


def _round_up(n, m):
    return ((n + m - 1) // m) * m


def _choose_tile(batch):
    """Pick (tile_rows, padded_batch). >=2 tiles when possible (v7x 2 TCs)."""
    b8 = _round_up(max(batch, 1), SUBLANE)
    if b8 <= SUBLANE:
        tb = SUBLANE
    elif b8 <= 2 * _TILE_CAP:
        tb = _round_up((b8 + 1) // 2, SUBLANE)   # split into two tiles
    else:
        tb = _TILE_CAP
    b_pad = _round_up(b8, tb)
    return tb, b_pad


def _policy_kernel(x_ref, p_ref, out_ref, *, in_pad, act_pad):
    # x: (TB, in_pad) -- obs lanes [0:obs), constant-1 lane at `obs`, rest 0.
    x = x_ref[...]
    w1 = p_ref[0:in_pad, :]                 # (in_pad, 128)  b1 folded in
    w2 = p_ref[in_pad:in_pad + LANE, :]     # (128, 128)     b2 + -1e30 pad folded in

    # fc1 + relu (accumulate in f32 on the MXU)
    h = jnp.dot(x, w1, preferred_element_type=jnp.float32)
    h = jnp.maximum(h, 0.0)                 # (TB, 128); lane `hidden` == 1.0

    # fc2: padded action lanes pick up -1e30 from the constant hidden lane
    logits = jnp.dot(h.astype(w2.dtype), w2, preferred_element_type=jnp.float32)

    # softmax over the action (lane) axis; padded lanes underflow to exp()==0.
    m = jnp.max(logits, axis=-1, keepdims=True)
    e = jnp.exp(logits - m)
    denom = jnp.sum(e, axis=-1, keepdims=True)
    probs = e / denom                       # exact normalization (correctness fix)

    out_ref[...] = probs[:, :act_pad]       # store only the (padded) action lanes


def pack_params(w1, b1, w2, b2, dtype=jnp.float32):
    """Pack fc1/fc2 (stored as (in,out)) into one ((in_pad+128), 128) buffer.

    Layout (biases folded, single DMA):
      rows [0 : in_pad]        W1ext: rows 0..obs-1 = W1; row `obs` = [b1 | 1 at
                               column `hidden`]; remaining rows zero.
      rows [in_pad : in_pad+128] W2ext: rows 0..hidden-1 = W2; row `hidden` =
                               [b2 | -1e30 in padded action lanes]; rest zero.
    """
    obs, hidden = w1.shape
    h2, action = w2.shape
    assert h2 == hidden and hidden < LANE and action <= LANE and obs + 1 <= LANE
    in_pad = _round_up(obs + 1, SUBLANE)

    p = jnp.zeros((in_pad + LANE, LANE), jnp.float32)
    # W1 block with b1 folded via the constant-1 input lane (row `obs`)
    p = p.at[:obs, :hidden].set(w1.astype(jnp.float32))
    p = p.at[obs, :hidden].set(b1.astype(jnp.float32))
    p = p.at[obs, hidden].set(1.0)          # drives constant hidden lane `hidden`
    # W2 block with b2 + action-pad mask folded via hidden lane `hidden`
    r0 = in_pad
    p = p.at[r0:r0 + hidden, :action].set(w2.astype(jnp.float32))
    pad_bias = jnp.full((LANE,), _NEG_BIG, jnp.float32).at[:action].set(
        b2.astype(jnp.float32))
    p = p.at[r0 + hidden, :].set(pad_bias)
    return p.astype(dtype)                  # bf16 recommended on v6e/v7x


@functools.partial(jax.jit, static_argnames=("action_space",))
def policy_forward_batched(x, packed_params, action_space):
    """x: (B, obs_space) -> probs: (B, action_space) f32 (softmax per row)."""
    B, obs = x.shape
    in_pad = packed_params.shape[0] - LANE
    assert obs + 1 <= in_pad, "packed params built for a different obs_space"
    act_pad = min(_round_up(action_space, SUBLANE), LANE)
    tb, b_pad = _choose_tile(B)
    dt = packed_params.dtype

    # Compact, sublane-aligned input: only `in_pad` (=8) lanes cross HBM.
    x_pad = jnp.zeros((b_pad, in_pad), dt)
    x_pad = x_pad.at[:, obs].set(1.0)                    # constant-1 lane (bias fold)
    x_pad = x_pad.at[:B, :obs].set(x.astype(dt))

    kernel = functools.partial(_policy_kernel, in_pad=in_pad, act_pad=act_pad)
    out = pl.pallas_call(
        kernel,
        out_shape=jax.ShapeDtypeStruct((b_pad, act_pad), jnp.float32),
        grid=(b_pad // tb,),
        in_specs=[
            pl.BlockSpec((tb, in_pad), lambda i: (i, 0)),            # observations
            pl.BlockSpec((in_pad + LANE, LANE), lambda i: (0, 0)),   # packed params
        ],
        out_specs=pl.BlockSpec((tb, act_pad), lambda i: (i, 0)),
        compiler_params=pltpu.CompilerParams(
            dimension_semantics=("parallel",)),                      # 2 TCs on v7x
    )(x_pad, packed_params)
    return out[:B, :action_space]


def policy_forward(x, packed_params, action_space):
    """Single observation, matching torch forward(): softmax(dim=0) of fc2.

    Note: for per-step RL rollouts prefer batching environments/timesteps —
    a B=1 Pallas launch is pure overhead versus a fused XLA GEMV.
    """
    return policy_forward_batched(x[None, :], packed_params, action_space)[0]


def init_policy_params(key, observation_space, hidden, action_space):
    """Deterministic init mimicking torch.nn.Linear (uniform +-1/sqrt(fan_in))."""
    k1, k2, k3, k4 = jax.random.split(key, 4)
    lim1 = 1.0 / jnp.sqrt(jnp.float32(observation_space))
    lim2 = 1.0 / jnp.sqrt(jnp.float32(hidden))
    # stored as (in, out) — transpose of torch's (out, in)
    w1 = jax.random.uniform(k1, (observation_space, hidden), jnp.float32, -lim1, lim1)
    b1 = jax.random.uniform(k2, (hidden,), jnp.float32, -lim1, lim1)
    w2 = jax.random.uniform(k3, (hidden, action_space), jnp.float32, -lim2, lim2)
    b2 = jax.random.uniform(k4, (action_space,), jnp.float32, -lim2, lim2)
    return w1, b1, w2, b2


def policy_forward_ref(x, w1, b1, w2, b2):
    h = jnp.maximum(x @ w1 + b1, 0.0)
    logits = h @ w2 + b2
    return jax.nn.softmax(logits, axis=-1)


if __name__ == "__main__":
    observation_space = 4   # e.g. CartPole / MountainCar observation
    hidden = 32
    action_space = 2
    batch = 12              # small vectorized rollout batch (not a multiple of 8)

    key = jax.random.PRNGKey(0)
    kx, kb, kp = jax.random.split(key, 3)
    x_single = jax.random.normal(kx, (observation_space,), jnp.float32)
    x_batch = jax.random.normal(kb, (batch, observation_space), jnp.float32)
    w1, b1, w2, b2 = init_policy_params(kp, observation_space, hidden, action_space)

    # f32 operands (safe default, v5e included)
    packed = pack_params(w1, b1, w2, b2, dtype=jnp.float32)

    # single-observation path (matches torch forward / softmax(dim=0))
    probs = policy_forward(x_single, packed, action_space)
    jax.block_until_ready(probs)
    ref = policy_forward_ref(x_single, w1, b1, w2, b2)
    assert probs.shape == (action_space,)
    assert jnp.allclose(probs, ref, atol=2e-3, rtol=2e-3)
    assert jnp.allclose(jnp.sum(probs), 1.0, atol=1e-5)

    # batched path (vectorized rollout), per-row softmax over actions
    probs_b = policy_forward_batched(x_batch, packed, action_space)
    jax.block_until_ready(probs_b)
    ref_b = policy_forward_ref(x_batch, w1, b1, w2, b2)
    assert probs_b.shape == (batch, action_space)
    assert jnp.allclose(probs_b, ref_b, atol=2e-3, rtol=2e-3)
    assert jnp.allclose(jnp.sum(probs_b, axis=-1), 1.0, atol=1e-5)

    # bf16 operand path (recommended on v6e/v7x MXUs); softmax math stays f32
    packed_bf16 = pack_params(w1, b1, w2, b2, dtype=jnp.bfloat16)
    probs_bf = policy_forward_batched(x_batch, packed_bf16, action_space)
    jax.block_until_ready(probs_bf)
    assert jnp.allclose(probs_bf, ref_b, atol=3e-2, rtol=3e-2)
    assert jnp.allclose(jnp.sum(probs_bf, axis=-1), 1.0, atol=1e-4)

    # NOTE: Policy.train / get_reward / put_data are host-side RL bookkeeping
    # (Adam step, reward shaping, trajectory buffer), not part of forward().
    print("KERNEL_OK")
</pallas_src>

<mosaic_0001>
module attributes {stable_mosaic.version = 11 : i64} {
  func.func @_policy_kernel(%arg0: i32, %arg1: memref<8x8xf32, #tpu.memory_space<vmem>>, %arg2: memref<136x128xf32, #tpu.memory_space<vmem>>, %arg3: memref<8x8xf32, #tpu.memory_space<vmem>>) attributes {dimension_semantics = [#tpu.dimension_semantics<parallel>], iteration_bounds = array<i64: 1>, scalar_prefetch = 0 : i64, scratch_operands = 0 : i64, tpu.core_type = #tpu.core_type<tc>, window_params = [{transform_indices = @transform_0, window_bounds = array<i64: 8, 8>}, {pipeline_mode = #tpu.pipeline_mode<synchronous>, transform_indices = @transform_1, window_bounds = array<i64: 136, 128>}, {transform_indices = @transform_2, window_bounds = array<i64: 8, 8>}]} {
    %c0 = arith.constant 0 : index
    %c0_0 = arith.constant 0 : index
    %0 = vector.load %arg1[%c0, %c0_0] : memref<8x8xf32, #tpu.memory_space<vmem>>, vector<8x8xf32>
    %c0_1 = arith.constant 0 : index
    %c0_2 = arith.constant 0 : index
    %1 = vector.load %arg2[%c0_1, %c0_2] : memref<136x128xf32, #tpu.memory_space<vmem>>, vector<8x128xf32>
    %c8 = arith.constant 8 : index
    %c0_3 = arith.constant 0 : index
    %2 = vector.load %arg2[%c8, %c0_3] : memref<136x128xf32, #tpu.memory_space<vmem>>, vector<128x128xf32>
    %cst = arith.constant dense<0.000000e+00> : vector<8x128xf32>
    %3 = tpu.matmul %0, %1, %cst {dimension_numbers = #tpu.dot_dimension_numbers<[1], [0], [0], [1], [0, 0, 1, 1], [], []>} : vector<8x8xf32>, vector<8x128xf32>, vector<8x128xf32> -> vector<8x128xf32>
    %cst_4 = arith.constant 0.000000e+00 : f32
    %4 = vector.broadcast %cst_4 : f32 to vector<8x128xf32>
    %5 = arith.maximumf %3, %4 : vector<8x128xf32>
    %cst_5 = arith.constant dense<0.000000e+00> : vector<8x128xf32>
    %6 = tpu.matmul %5, %2, %cst_5 {dimension_numbers = #tpu.dot_dimension_numbers<[1], [0], [0], [1], [0, 0, 1, 1], [], []>} : vector<8x128xf32>, vector<128x128xf32>, vector<8x128xf32> -> vector<8x128xf32>
    %cst_6 = arith.constant dense<0xFF800000> : vector<8xf32>
    %7 = vector.multi_reduction <maximumf>, %6, %cst_6 [1] : vector<8x128xf32> to vector<8xf32>
    %8 = vector.shape_cast %7 : vector<8xf32> to vector<8x1xf32>
    %9 = vector.broadcast %8 : vector<8x1xf32> to vector<8x128xf32>
    %10 = arith.subf %6, %9 : vector<8x128xf32>
    %11 = math.exp %10 : vector<8x128xf32>
    %cst_7 = arith.constant dense<0.000000e+00> : vector<8xf32>
    %12 = vector.multi_reduction <add>, %11, %cst_7 [1] : vector<8x128xf32> to vector<8xf32>
    %13 = vector.shape_cast %12 : vector<8xf32> to vector<8x1xf32>
    %14 = vector.broadcast %13 : vector<8x1xf32> to vector<8x128xf32>
    %15 = arith.divf %11, %14 : vector<8x128xf32>
    %16 = vector.extract_strided_slice %15 {offsets = [0, 0], sizes = [8, 8], strides = [1, 1]} : vector<8x128xf32> to vector<8x8xf32>
    %c0_8 = arith.constant 0 : index
    %c0_9 = arith.constant 0 : index
    %17 = vector.load %arg3[%c0_8, %c0_9] : memref<8x8xf32, #tpu.memory_space<vmem>>, vector<8x8xf32>
    tpu.vector_store %arg3[%c0_8, %c0_9], %16 {strides = array<i32>} : memref<8x8xf32, #tpu.memory_space<vmem>>, vector<8x8xf32>,
    return
  }
  func.func @transform_0(%arg0: i32) -> (i32, i32) {
    %c0_i32 = arith.constant 0 : i32
    %c0_i32_0 = arith.constant 0 : i32
    return %arg0, %c0_i32 : i32, i32
  }
  func.func @transform_1(%arg0: i32) -> (i32, i32) {
    %c0_i32 = arith.constant 0 : i32
    %c0_i32_0 = arith.constant 0 : i32
    %c0_i32_1 = arith.constant 0 : i32
    return %c0_i32, %c0_i32_0 : i32, i32
  }
  func.func @transform_2(%arg0: i32) -> (i32, i32) {
    %c0_i32 = arith.constant 0 : i32
    %c0_i32_0 = arith.constant 0 : i32
    return %arg0, %c0_i32 : i32, i32
  }
}

</mosaic_0001>

<llo_original>
// kernel: policy_forward_batched.1
$region0: #{policy_forward_batched.1}
  #allocation0 [shape = 'u32[]', space=smem, size = 0x4, offset = 0x4, fixed_abs, tag = 'smem constant byte address 0x4 - core index']
  #allocation1 [shape = 'u32[144,128]{1,0:T(1,128)}', space=vmem, size = 0x12000, scoped, tag = 'internal scratch']
  %s0 = inlined_call_operand.vmem [shape: f32[8,8], index: 0, kind: input, shape index: {}]
  %s1 = inlined_call_operand.hbm [shape: f32[136,128], index: 1, kind: input, shape index: {}]
  %s2 = inlined_call_operand.vmem [shape: f32[8,8], index: 2, kind: output, shape index: {}]
  %s3 = sld [smem:[#allocation0]]
  $region22: #{policy_forward_batched.1} parent=0
    _
  %s5 = ssub.s32 1, %s3
  %s6 = scalar_select 0, %s5, %s3
  $region1: #{policy_forward_batched.1} parent=0
    #allocation2 [shape = 'u8[69632]{0}', space=vmem, size = 0x11000, scoped, tag = 'input window, operand 1, single buffered']
    #allocation3 [shape = 's32[1]{0}', space=sflag, size = 0x4, scoped, tag = 'scoped memory for policy_forward_batched.1']
    %7 = vsyncpa [#allocation3], 0
    // Predicated region
    $region2: #{policy_forward_batched.1} parent=1 // pred_check
      _
    $region3: #{policy_forward_batched.1} parent=1 // pred_check_branch
      %9 = sbr.rel (0) target = $region5
    $region4: #{policy_forward_batched.1} parent=1 // pred_region
      _
    $region5: #{policy_forward_batched.1} parent=1 // pred_fallthru
      _
    // Predicated region
    $region6: #{policy_forward_batched.1} parent=1 // pred_check
      _
    $region7: #{policy_forward_batched.1} parent=1 // pred_check_branch
      %11 = sbr.rel (0) target = $region9
    $region8: #{policy_forward_batched.1} parent=1 // pred_region
      %s13 = ssub.s32 2176, 2176
      %14 = vsyncadd [#allocation3], %s13
      %s15 = sshll.u32 [#allocation2], 4
      %s16 = int_to_ptr.vmem [resolvable:$true] %s15
      %21 = dma.hbm_to_vmem [thread:$0]  %s1, 2176, %s16, [#allocation3], 128, 128, 8
    $region9: #{policy_forward_batched.1} parent=1 // pred_fallthru
      _
    // Predicated region
    $region10: #{policy_forward_batched.1} parent=1 // pred_check
      _
    $region11: #{policy_forward_batched.1} parent=1 // pred_check_branch
      %23 = sbr.rel (0) target = $region13
    $region12: #{policy_forward_batched.1} parent=1 // pred_region
      %24 = dma.done [#allocation3], 2176
    $region13: #{policy_forward_batched.1} parent=1 // pred_fallthru
      _
    %v25 = vld [vmem:[%s0] sm:$0xff]
    %v26 = vld [vmem:[#allocation2] sm:$0xff]
    %v27 = vld [vmem:[#allocation2 + $0x8] sm:$0xff]
    %v28 = vld [vmem:[#allocation2 + $0x10] sm:$0xff]
    %v29 = vld [vmem:[#allocation2 + $0x18] sm:$0xff]
    %v30 = vld [vmem:[#allocation2 + $0x20] sm:$0xff]
    %v31 = vld [vmem:[#allocation2 + $0x28] sm:$0xff]
    %v32 = vld [vmem:[#allocation2 + $0x30] sm:$0xff]
    %v33 = vld [vmem:[#allocation2 + $0x38] sm:$0xff]
    %v34 = vld [vmem:[#allocation2 + $0x40] sm:$0xff]
    %v35 = vld [vmem:[#allocation2 + $0x48] sm:$0xff]
    %v36 = vld [vmem:[#allocation2 + $0x50] sm:$0xff]
    %v37 = vld [vmem:[#allocation2 + $0x58] sm:$0xff]
    %v38 = vld [vmem:[#allocation2 + $0x60] sm:$0xff]
    %v39 = vld [vmem:[#allocation2 + $0x68] sm:$0xff]
    %v40 = vld [vmem:[#allocation2 + $0x70] sm:$0xff]
    %v41 = vld [vmem:[#allocation2 + $0x78] sm:$0xff]
    %v42 = vld [vmem:[#allocation2 + $0x80] sm:$0xff]
    %vm43 = vcmask 64512
    %v45 = vsel %vm43, %v25, 0
    %47 = vmatprep.subr.mxu0 0.0
    %48 = vmatpush1.msra.mxu0 %v26
    %49 = vmatprep.subr.mxu0 0.0
    %50 = vmatpush1.msra.mxu0 0.0
    %51 = vmatprep.subr.mxu0 0.0
    %52 = vmatpush1.msra.mxu0 0.0
    %53 = vmatprep.subr.mxu0 0.0
    %54 = vmatpush1.msra.mxu0 0.0
    %55 = vmatprep.subr.mxu0 0.0
    %56 = vmatpush1.msra.mxu0 0.0
    %57 = vmatprep.subr.mxu0 0.0
    %58 = vmatpush1.msra.mxu0 0.0
    %59 = vmatprep.subr.mxu0 0.0
    %60 = vmatpush1.msra.mxu0 0.0
    %61 = vmatprep.subr.mxu0 0.0
    %62 = vmatpush1.msra.mxu0 0.0
    %63 = vmatprep.subr.mxu0 0.0
    %64 = vmatpush1.msra.mxu0 0.0
    %65 = vmatprep.subr.mxu0 0.0
    %66 = vmatpush1.msra.mxu0 0.0
    %67 = vmatprep.subr.mxu0 0.0
    %68 = vmatpush1.msra.mxu0 0.0
    %69 = vmatprep.subr.mxu0 0.0
    %70 = vmatpush1.msra.mxu0 0.0
    %71 = vmatprep.subr.mxu0 0.0
    %72 = vmatpush1.msra.mxu0 0.0
    %73 = vmatprep.subr.mxu0 0.0
    %74 = vmatpush1.msra.mxu0 0.0
    %75 = vmatprep.subr.mxu0 0.0
    %76 = vmatpush1.msra.mxu0 0.0
    %77 = vmatprep.subr.mxu0 0.0
    %78 = vmatpush1.msra.mxu0 0.0
    %79 = vmatprep.subr.mxu0 0.0
    %80 = vmatpush1.msra.mxu0 0.0
    %81 = vmatprep.subr.mxu0 0.0
    %82 = vmatpush1.msra.mxu0 0.0
    %83 = vmatprep.subr.mxu0 0.0
    %84 = vmatpush1.msra.mxu0 0.0
    %85 = vmatprep.subr.mxu0 0.0
    %86 = vmatpush1.msra.mxu0 0.0
    %87 = vmatprep.subr.mxu0 0.0
    %88 = vmatpush1.msra.mxu0 0.0
    %89 = vmatprep.subr.mxu0 0.0
    %90 = vmatpush1.msra.mxu0 0.0
    %91 = vmatprep.subr.mxu0 0.0
    %92 = vmatpush1.msra.mxu0 0.0
    %93 = vmatprep.subr.mxu0 0.0
    %94 = vmatpush1.msra.mxu0 0.0
    %95 = vmatprep.subr.mxu0 0.0
    %96 = vmatpush1.msra.mxu0 0.0
    %97 = vmatprep.subr.mxu0 0.0
    %98 = vmatpush1.msra.mxu0 0.0
    %99 = vmatprep.subr.mxu0 0.0
    %100 = vmatpush1.msra.mxu0 0.0
    %101 = vmatprep.subr.mxu0 0.0
    %102 = vmatpush1.msra.mxu0 0.0
    %103 = vmatprep.subr.mxu0 0.0
    %104 = vmatpush1.msra.mxu0 0.0
    %105 = vmatprep.subr.mxu0 0.0
    %106 = vmatpush1.msra.mxu0 0.0
    %107 = vmatprep.subr.mxu0 0.0
    %108 = vmatpush1.msra.mxu0 0.0
    %109 = vmatprep.subr.mxu0 0.0
    %110 = vmatpush1.msra.mxu0 0.0
    %111 = vmatprep.mubr.f32.mxu0 0.0
    %112 = vmatmul.mubr.f32.gmra.mrb[0].mxu0 %v45
    %v113 = vpop.f32.mrb[0].mxu0
    %v114 = vadd.f32 0.0, %v113
    %v115 = vpop.f32.mrb[0].mxu0
    %116 = vdwg.mxu0
    %v117 = vmax.f32 %v114, 0.0
    %118 = vmatprep.subr.mxu0 0.0
    %119 = vmatpush1.msra.mxu0 %v27
    %120 = vmatprep.subr.mxu0 0.0
    %121 = vmatpush1.msra.mxu0 %v28
    %122 = vmatprep.subr.mxu0 0.0
    %123 = vmatpush1.msra.mxu0 %v29
    %124 = vmatprep.subr.mxu0 0.0
    %125 = vmatpush1.msra.mxu0 %v30
    %126 = vmatprep.subr.mxu0 0.0
    %127 = vmatpush1.msra.mxu0 %v31
    %128 = vmatprep.subr.mxu0 0.0
    %129 = vmatpush1.msra.mxu0 %v32
    %130 = vmatprep.subr.mxu0 0.0
    %131 = vmatpush1.msra.mxu0 %v33
    %132 = vmatprep.subr.mxu0 0.0
    %133 = vmatpush1.msra.mxu0 %v34
    %134 = vmatprep.subr.mxu0 0.0
    %135 = vmatpush1.msra.mxu0 %v35
    %136 = vmatprep.subr.mxu0 0.0
    %137 = vmatpush1.msra.mxu0 %v36
    %138 = vmatprep.subr.mxu0 0.0
    %139 = vmatpush1.msra.mxu0 %v37
    %140 = vmatprep.subr.mxu0 0.0
    %141 = vmatpush1.msra.mxu0 %v38
    %142 = vmatprep.subr.mxu0 0.0
    %143 = vmatpush1.msra.mxu0 %v39
    %144 = vmatprep.subr.mxu0 0.0
    %145 = vmatpush1.msra.mxu0 %v40
    %146 = vmatprep.subr.mxu0 0.0
    %147 = vmatpush1.msra.mxu0 %v41
    %148 = vmatprep.subr.mxu0 0.0
    %149 = vmatpush1.msra.mxu0 %v42
    %150 = vmatprep.subr.mxu0 0.0
    %151 = vmatpush1.msra.mxu0 0.0
    %152 = vmatprep.subr.mxu0 0.0
    %153 = vmatpush1.msra.mxu0 0.0
    %154 = vmatprep.subr.mxu0 0.0
    %155 = vmatpush1.msra.mxu0 0.0
    %156 = vmatprep.subr.mxu0 0.0
    %157 = vmatpush1.msra.mxu0 0.0
    %158 = vmatprep.subr.mxu0 0.0
    %159 = vmatpush1.msra.mxu0 0.0
    %160 = vmatprep.subr.mxu0 0.0
    %161 = vmatpush1.msra.mxu0 0.0
    %162 = vmatprep.subr.mxu0 0.0
    %163 = vmatpush1.msra.mxu0 0.0
    %164 = vmatprep.subr.mxu0 0.0
    %165 = vmatpush1.msra.mxu0 0.0
    %166 = vmatprep.subr.mxu0 0.0
    %167 = vmatpush1.msra.mxu0 0.0
    %168 = vmatprep.subr.mxu0 0.0
    %169 = vmatpush1.msra.mxu0 0.0
    %170 = vmatprep.subr.mxu0 0.0
    %171 = vmatpush1.msra.mxu0 0.0
    %172 = vmatprep.subr.mxu0 0.0
    %173 = vmatpush1.msra.mxu0 0.0
    %174 = vmatprep.subr.mxu0 0.0
    %175 = vmatpush1.msra.mxu0 0.0
    %176 = vmatprep.subr.mxu0 0.0
    %177 = vmatpush1.msra.mxu0 0.0
    %178 = vmatprep.subr.mxu0 0.0
    %179 = vmatpush1.msra.mxu0 0.0
    %180 = vmatprep.subr.mxu0 0.0
    %181 = vmatpush1.msra.mxu0 0.0
    %182 = vmatprep.mubr.f32.mxu0 0.0
    %183 = vmatmul.mubr.f32.gmra.mrb[0].mxu0 %v117
    %v184 = vpop.f32.mrb[0].mxu0
    %v185 = vadd.f32 0.0, %v184
    %v186 = vpop.f32.mrb[0].mxu0
    %187 = vdwg.mxu0
    %188 = vmax.xlane.f32.xlu0 %v185
    %v189 = vpop.xlane.xlu0 %188
    %v190 = vsub.f32 %v185, %v189
    %v191 = vmul.f32 %v190, 1.442695
    %v192 = vpow.pop %v191
    %193 = vadd.xlane.f32.xlu0 %v192
    %v194 = vpop.xlane.xlu0 %193
    %v195 = vrcp.pop %v194
    %v196 = vmul.f32 %v192, %v195
    %197 = vst.msk [vmem:[%s2] sm:$0xff] %vm43, %v196
    // Predicated region
    $region14: #{policy_forward_batched.1} parent=1 // pred_check
      _
    $region15: #{policy_forward_batched.1} parent=1 // pred_check_branch
      %199 = sbr.rel (0) target = $region17
    $region16: #{policy_forward_batched.1} parent=1 // pred_region
      _
    $region17: #{policy_forward_batched.1} parent=1 // pred_fallthru
      _
    // Predicated region
    $region18: #{policy_forward_batched.1} parent=1 // pred_check
      _
    $region19: #{policy_forward_batched.1} parent=1 // pred_check_branch
      %201 = sbr.rel (0) target = $region21
    $region20: #{policy_forward_batched.1} parent=1 // pred_region
      _
    $region21: #{policy_forward_batched.1} parent=1 // pred_fallthru
      _
    %202 = vsyncpa [#allocation3], 1

</llo_original>
